<compile_context>
chip_gen: v5e
topology: v5e:2x2
jax: 0.10.0
libtpu: 0.0.40
codegen_flags: <defaults>
</compile_context>

<pallas_src>
import jax
import jax.numpy as jnp
from jax.experimental import pallas as pl
from jax.experimental.pallas import tpu as pltpu


def margin_predictor_kernel(xt_ref, w1_ref, b1_ref, w2_ref, b2_ref,
                            w3_ref, b3_ref, w4_ref, b4_ref, o_ref):
    # xt_ref: (K, TB) — features on sublanes, batch on lanes.
    xt = xt_ref[...]

    h1 = jnp.dot(w1_ref[...], xt, preferred_element_type=jnp.float32) + b1_ref[...]
    h1 = jnp.maximum(h1, 0.0)                       # (128, TB)

    h2 = jnp.dot(w2_ref[...], h1, preferred_element_type=jnp.float32) + b2_ref[...]
    h2 = jnp.maximum(h2, 0.0)                       # (64, TB)

    h3 = jnp.dot(w3_ref[...], h2, preferred_element_type=jnp.float32) + b3_ref[...]
    h3 = jnp.maximum(h3, 0.0)                       # (32, TB)

    h4 = jnp.dot(w4_ref[...], h3, preferred_element_type=jnp.float32) + b4_ref[...]
    o_ref[...] = jnp.tanh(h4)                       # (1, TB) — lane-dense store


def margin_predictor(x, freight_revenue, params, *, tb=512):
    """x: (B, F) f32, freight_revenue: (B, 1) f32 -> (B, 1) f32."""
    B, F = x.shape
    K = F + 1
    w1, b1, w2, b2, w3, b3, w4, b4 = params

    # Pre-concat fr into x and put batch on the lane axis.
    xt = jnp.concatenate([x, freight_revenue], axis=1).T      # (K, B)

    # Pad batch up to a multiple of the (128-aligned) tile; padded columns are
    # computed and sliced off afterwards.
    bp = tb * pl.cdiv(B, tb)
    if bp != B:
        xt = jnp.pad(xt, ((0, 0), (0, bp - B)))
    grid = (bp // tb,)

    def const_spec(shape):
        # full-array block, same block for every grid step -> stays VMEM-resident
        return pl.BlockSpec(shape, lambda i: (0, 0))

    param_bytes = 4 * sum(p.size for p in params)
    cost = pl.CostEstimate(
        flops=2 * bp * (K * 128 + 128 * 64 + 64 * 32 + 32 * 1),
        transcendentals=bp,                                    # tanh
        bytes_accessed=4 * bp * (K + 1) + param_bytes,
    )

    out = pl.pallas_call(
        margin_predictor_kernel,
        out_shape=jax.ShapeDtypeStruct((1, bp), jnp.float32),
        grid_spec=pltpu.PrefetchScalarGridSpec(
            num_scalar_prefetch=0,
            grid=grid,
            in_specs=[
                pl.BlockSpec((K, tb), lambda i: (0, i)),       # activations tile
                const_spec(w1.shape), const_spec(b1.shape),
                const_spec(w2.shape), const_spec(b2.shape),
                const_spec(w3.shape), const_spec(b3.shape),
                const_spec(w4.shape), const_spec(b4.shape),
            ],
            out_specs=pl.BlockSpec((1, tb), lambda i: (0, i)),
        ),
        compiler_params=pltpu.CompilerParams(
            dimension_semantics=("parallel",),
        ),
        cost_estimate=cost,
    )(xt, w1, b1, w2, b2, w3, b3, w4, b4)

    return out[:, :B].T                                        # (B, 1)


def init_params(key, input_size):
    """Deterministic init mirroring nn.Linear (uniform +/- 1/sqrt(fan_in)).
    Weights stored torch-style (out_features, in_features); biases (out, 1)."""
    dims = [(128, input_size + 1), (64, 128), (32, 64), (1, 32)]
    keys = jax.random.split(key, 2 * len(dims))
    params = []
    for i, (fout, fin) in enumerate(dims):
        bound = 1.0 / jnp.sqrt(jnp.float32(fin))
        w = jax.random.uniform(keys[2 * i], (fout, fin), jnp.float32, -bound, bound)
        b = jax.random.uniform(keys[2 * i + 1], (fout, 1), jnp.float32, -bound, bound)
        params += [w, b]
    return tuple(params)


def reference_forward(x, fr, params):
    """Plain-JAX reference of the PyTorch forward (sanity check)."""
    w1, b1, w2, b2, w3, b3, w4, b4 = params
    h = jnp.concatenate([x, fr], axis=1)
    h = jnp.maximum(h @ w1.T + b1.T, 0.0)
    h = jnp.maximum(h @ w2.T + b2.T, 0.0)
    h = jnp.maximum(h @ w3.T + b3.T, 0.0)
    return jnp.tanh(h @ w4.T + b4.T)


if __name__ == "__main__":
    input_size = 31          # fc1 sees input_size + 1 = 32 features
    batch = 8                # small test batch (padded internally to the tile)

    key = jax.random.PRNGKey(0)
    kx, kf, kp = jax.random.split(key, 3)
    x = jax.random.normal(kx, (batch, input_size), dtype=jnp.float32)
    freight_revenue = jax.random.normal(kf, (batch, 1), dtype=jnp.float32)
    params = init_params(kp, input_size)

    out = margin_predictor(x, freight_revenue, params)
    out = jax.block_until_ready(out)

    ref = reference_forward(x, freight_revenue, params)
    assert out.shape == (batch, 1)
    assert jnp.allclose(out, ref, atol=1e-5, rtol=1e-4)

    print("KERNEL_OK")
</pallas_src>

<mosaic_0001>
module attributes {stable_mosaic.version = 11 : i64} {
  func.func @margin_predictor_kernel(%arg0: i32, %arg1: memref<32x512xf32, #tpu.memory_space<vmem>>, %arg2: memref<128x32xf32, #tpu.memory_space<vmem>>, %arg3: memref<128x1xf32, #tpu.memory_space<vmem>>, %arg4: memref<64x128xf32, #tpu.memory_space<vmem>>, %arg5: memref<64x1xf32, #tpu.memory_space<vmem>>, %arg6: memref<32x64xf32, #tpu.memory_space<vmem>>, %arg7: memref<32x1xf32, #tpu.memory_space<vmem>>, %arg8: memref<1x32xf32, #tpu.memory_space<vmem>>, %arg9: memref<1x1xf32, #tpu.memory_space<vmem>>, %arg10: memref<1x512xf32, #tpu.memory_space<vmem>>) attributes {dimension_semantics = [#tpu.dimension_semantics<parallel>], iteration_bounds = array<i64: 1>, scalar_prefetch = 0 : i64, scratch_operands = 0 : i64, tpu.core_type = #tpu.core_type<tc>, window_params = [{transform_indices = @transform_0, window_bounds = array<i64: 32, 512>}, {pipeline_mode = #tpu.pipeline_mode<synchronous>, transform_indices = @transform_1, window_bounds = array<i64: 128, 32>}, {pipeline_mode = #tpu.pipeline_mode<synchronous>, transform_indices = @transform_2, window_bounds = array<i64: 128, 1>}, {pipeline_mode = #tpu.pipeline_mode<synchronous>, transform_indices = @transform_3, window_bounds = array<i64: 64, 128>}, {pipeline_mode = #tpu.pipeline_mode<synchronous>, transform_indices = @transform_4, window_bounds = array<i64: 64, 1>}, {pipeline_mode = #tpu.pipeline_mode<synchronous>, transform_indices = @transform_5, window_bounds = array<i64: 32, 64>}, {pipeline_mode = #tpu.pipeline_mode<synchronous>, transform_indices = @transform_6, window_bounds = array<i64: 32, 1>}, {pipeline_mode = #tpu.pipeline_mode<synchronous>, transform_indices = @transform_7, window_bounds = array<i64: 1, 32>}, {pipeline_mode = #tpu.pipeline_mode<synchronous>, transform_indices = @transform_8, window_bounds = array<i64: 1, 1>}, {transform_indices = @transform_9, window_bounds = array<i64: 1, 512>}]} {
    %c0 = arith.constant 0 : index
    %c0_0 = arith.constant 0 : index
    %0 = vector.load %arg1[%c0, %c0_0] : memref<32x512xf32, #tpu.memory_space<vmem>>, vector<32x512xf32>
    %c0_1 = arith.constant 0 : index
    %c0_2 = arith.constant 0 : index
    %1 = vector.load %arg2[%c0_1, %c0_2] : memref<128x32xf32, #tpu.memory_space<vmem>>, vector<128x32xf32>
    %cst = arith.constant dense<0.000000e+00> : vector<128x512xf32>
    %2 = tpu.matmul %1, %0, %cst {dimension_numbers = #tpu.dot_dimension_numbers<[1], [0], [0], [1], [0, 0, 1, 1], [], []>} : vector<128x32xf32>, vector<32x512xf32>, vector<128x512xf32> -> vector<128x512xf32>
    %c0_3 = arith.constant 0 : index
    %c0_4 = arith.constant 0 : index
    %3 = vector.load %arg3[%c0_3, %c0_4] : memref<128x1xf32, #tpu.memory_space<vmem>>, vector<128x1xf32>
    %4 = vector.broadcast %3 : vector<128x1xf32> to vector<128x512xf32>
    %5 = arith.addf %2, %4 : vector<128x512xf32>
    %cst_5 = arith.constant 0.000000e+00 : f32
    %6 = vector.broadcast %cst_5 : f32 to vector<128x512xf32>
    %7 = arith.maximumf %5, %6 : vector<128x512xf32>
    %c0_6 = arith.constant 0 : index
    %c0_7 = arith.constant 0 : index
    %8 = vector.load %arg4[%c0_6, %c0_7] : memref<64x128xf32, #tpu.memory_space<vmem>>, vector<64x128xf32>
    %cst_8 = arith.constant dense<0.000000e+00> : vector<64x512xf32>
    %9 = tpu.matmul %8, %7, %cst_8 {dimension_numbers = #tpu.dot_dimension_numbers<[1], [0], [0], [1], [0, 0, 1, 1], [], []>} : vector<64x128xf32>, vector<128x512xf32>, vector<64x512xf32> -> vector<64x512xf32>
    %c0_9 = arith.constant 0 : index
    %c0_10 = arith.constant 0 : index
    %10 = vector.load %arg5[%c0_9, %c0_10] : memref<64x1xf32, #tpu.memory_space<vmem>>, vector<64x1xf32>
    %11 = vector.broadcast %10 : vector<64x1xf32> to vector<64x512xf32>
    %12 = arith.addf %9, %11 : vector<64x512xf32>
    %cst_11 = arith.constant 0.000000e+00 : f32
    %13 = vector.broadcast %cst_11 : f32 to vector<64x512xf32>
    %14 = arith.maximumf %12, %13 : vector<64x512xf32>
    %c0_12 = arith.constant 0 : index
    %c0_13 = arith.constant 0 : index
    %15 = vector.load %arg6[%c0_12, %c0_13] : memref<32x64xf32, #tpu.memory_space<vmem>>, vector<32x64xf32>
    %cst_14 = arith.constant dense<0.000000e+00> : vector<32x512xf32>
    %16 = tpu.matmul %15, %14, %cst_14 {dimension_numbers = #tpu.dot_dimension_numbers<[1], [0], [0], [1], [0, 0, 1, 1], [], []>} : vector<32x64xf32>, vector<64x512xf32>, vector<32x512xf32> -> vector<32x512xf32>
    %c0_15 = arith.constant 0 : index
    %c0_16 = arith.constant 0 : index
    %17 = vector.load %arg7[%c0_15, %c0_16] : memref<32x1xf32, #tpu.memory_space<vmem>>, vector<32x1xf32>
    %18 = vector.broadcast %17 : vector<32x1xf32> to vector<32x512xf32>
    %19 = arith.addf %16, %18 : vector<32x512xf32>
    %cst_17 = arith.constant 0.000000e+00 : f32
    %20 = vector.broadcast %cst_17 : f32 to vector<32x512xf32>
    %21 = arith.maximumf %19, %20 : vector<32x512xf32>
    %c0_18 = arith.constant 0 : index
    %c0_19 = arith.constant 0 : index
    %22 = vector.load %arg8[%c0_18, %c0_19] : memref<1x32xf32, #tpu.memory_space<vmem>>, vector<1x32xf32>
    %cst_20 = arith.constant dense<0.000000e+00> : vector<1x512xf32>
    %23 = tpu.matmul %22, %21, %cst_20 {dimension_numbers = #tpu.dot_dimension_numbers<[1], [0], [0], [1], [0, 0, 1, 1], [], []>} : vector<1x32xf32>, vector<32x512xf32>, vector<1x512xf32> -> vector<1x512xf32>
    %c0_21 = arith.constant 0 : index
    %c0_22 = arith.constant 0 : index
    %24 = vector.load %arg9[%c0_21, %c0_22] : memref<1x1xf32, #tpu.memory_space<vmem>>, vector<1x1xf32>
    %25 = vector.broadcast %24 : vector<1x1xf32> to vector<1x512xf32>
    %26 = arith.addf %23, %25 : vector<1x512xf32>
    %27 = math.tanh %26 : vector<1x512xf32>
    %c0_23 = arith.constant 0 : index
    %c0_24 = arith.constant 0 : index
    %28 = vector.load %arg10[%c0_23, %c0_24] : memref<1x512xf32, #tpu.memory_space<vmem>>, vector<1x512xf32>
    tpu.vector_store %arg10[%c0_23, %c0_24], %27 {strides = array<i32>} : memref<1x512xf32, #tpu.memory_space<vmem>>, vector<1x512xf32>,
    return
  }
  func.func @transform_0(%arg0: i32) -> (i32, i32) {
    %c0_i32 = arith.constant 0 : i32
    %c0_i32_0 = arith.constant 0 : i32
    return %c0_i32, %arg0 : i32, i32
  }
  func.func @transform_1(%arg0: i32) -> (i32, i32) {
    %c0_i32 = arith.constant 0 : i32
    %c0_i32_0 = arith.constant 0 : i32
    %c0_i32_1 = arith.constant 0 : i32
    return %c0_i32, %c0_i32_0 : i32, i32
  }
  func.func @transform_2(%arg0: i32) -> (i32, i32) {
    %c0_i32 = arith.constant 0 : i32
    %c0_i32_0 = arith.constant 0 : i32
    %c0_i32_1 = arith.constant 0 : i32
    return %c0_i32, %c0_i32_0 : i32, i32
  }
  func.func @transform_3(%arg0: i32) -> (i32, i32) {
    %c0_i32 = arith.constant 0 : i32
    %c0_i32_0 = arith.constant 0 : i32
    %c0_i32_1 = arith.constant 0 : i32
    return %c0_i32, %c0_i32_0 : i32, i32
  }
  func.func @transform_4(%arg0: i32) -> (i32, i32) {
    %c0_i32 = arith.constant 0 : i32
    %c0_i32_0 = arith.constant 0 : i32
    %c0_i32_1 = arith.constant 0 : i32
    return %c0_i32, %c0_i32_0 : i32, i32
  }
  func.func @transform_5(%arg0: i32) -> (i32, i32) {
    %c0_i32 = arith.constant 0 : i32
    %c0_i32_0 = arith.constant 0 : i32
    %c0_i32_1 = arith.constant 0 : i32
    return %c0_i32, %c0_i32_0 : i32, i32
  }
  func.func @transform_6(%arg0: i32) -> (i32, i32) {
    %c0_i32 = arith.constant 0 : i32
    %c0_i32_0 = arith.constant 0 : i32
    %c0_i32_1 = arith.constant 0 : i32
    return %c0_i32, %c0_i32_0 : i32, i32
  }
  func.func @transform_7(%arg0: i32) -> (i32, i32) {
    %c0_i32 = arith.constant 0 : i32
    %c0_i32_0 = arith.constant 0 : i32
    %c0_i32_1 = arith.constant 0 : i32
    return %c0_i32, %c0_i32_0 : i32, i32
  }
  func.func @transform_8(%arg0: i32) -> (i32, i32) {
    %c0_i32 = arith.constant 0 : i32
    %c0_i32_0 = arith.constant 0 : i32
    %c0_i32_1 = arith.constant 0 : i32
    return %c0_i32, %c0_i32_0 : i32, i32
  }
  func.func @transform_9(%arg0: i32) -> (i32, i32) {
    %c0_i32 = arith.constant 0 : i32
    %c0_i32_0 = arith.constant 0 : i32
    return %c0_i32, %arg0 : i32, i32
  }
}

</mosaic_0001>

<llo_original>
// kernel: tpu_custom_call.1
$region0: #{tpu_custom_call.1}
  #allocation0 [shape = 'u32[]', space=smem, size = 0x4, offset = 0x4, fixed_abs, tag = 'smem constant byte address 0x4 - core index']
  #allocation1 [shape = 'u32[72,128]{1,0:T(1,128)}', space=vmem, size = 0x9000, scoped, tag = 'internal scratch']
  #allocation2 [shape = 'f32[1,1]{1,0:T(1,128)S(1)}', space=vmem, size = 0x200, scoped, tag = 'scoped memory for tpu_custom_call.1']
  %s0 = inlined_call_operand.vmem [shape: f32[32,512], index: 0, kind: input, shape index: {}]
  %s1 = inlined_call_operand.vmem [shape: f32[128,32], index: 1, kind: input, shape index: {}]
  %s2 = inlined_call_operand.vmem [shape: f32[128,1], index: 2, kind: input, shape index: {}]
  %s3 = inlined_call_operand.vmem [shape: f32[64,128], index: 3, kind: input, shape index: {}]
  %s4 = inlined_call_operand.vmem [shape: f32[64,1], index: 4, kind: input, shape index: {}]
  %s5 = inlined_call_operand.vmem [shape: f32[32,64], index: 5, kind: input, shape index: {}]
  %s6 = inlined_call_operand.vmem [shape: f32[32,1], index: 6, kind: input, shape index: {}]
  %s7 = inlined_call_operand.vmem [shape: f32[1,32], index: 7, kind: input, shape index: {}]
  %s8 = inlined_call_operand.<no memory space> [shape: f32[1,1], index: 8, kind: input, shape index: {}]
  %s9 = inlined_call_operand.hbm [shape: f32[1,512], index: 9, kind: output, shape index: {}]
  %s10 = sld [smem:[#allocation0]]
  $region46: #{tpu_custom_call.1} parent=0
    _
  %s12 = ssub.s32 1, %s10
  %s13 = scalar_select 0, %s12, %s10
  %v14 = vstv %s8
  %15 = vst [vmem:[#allocation2] sm:$0x1] %v14
  $region1: #{tpu_custom_call.1} parent=0
    #allocation3 [shape = 'u8[2048]{0}', space=vmem, size = 0x800, scoped, tag = 'output window, operand 0, single buffered']
    #allocation4 [shape = 's32[1]{0}', space=sflag, size = 0x4, scoped, tag = 'scoped memory for tpu_custom_call.1']
    %16 = vsyncpa [#allocation4], 0
    // Predicated region
    $region2: #{tpu_custom_call.1} parent=1 // pred_check
      _
    $region3: #{tpu_custom_call.1} parent=1 // pred_check_branch
      %18 = sbr.rel (0) target = $region5
    $region4: #{tpu_custom_call.1} parent=1 // pred_region
      _
    $region5: #{tpu_custom_call.1} parent=1 // pred_fallthru
      _
    // Predicated region
    $region6: #{tpu_custom_call.1} parent=1 // pred_check
      _
    $region7: #{tpu_custom_call.1} parent=1 // pred_check_branch
      %20 = sbr.rel (0) target = $region9
    $region8: #{tpu_custom_call.1} parent=1 // pred_region
      _
    $region9: #{tpu_custom_call.1} parent=1 // pred_fallthru
      _
    // Predicated region
    $region10: #{tpu_custom_call.1} parent=1 // pred_check
      _
    $region11: #{tpu_custom_call.1} parent=1 // pred_check_branch
      %22 = sbr.rel (0) target = $region13
    $region12: #{tpu_custom_call.1} parent=1 // pred_region
      _
    $region13: #{tpu_custom_call.1} parent=1 // pred_fallthru
      _
    // Predicated region
    $region14: #{tpu_custom_call.1} parent=1 // pred_check
      _
    $region15: #{tpu_custom_call.1} parent=1 // pred_check_branch
      %24 = sbr.rel (0) target = $region17
    $region16: #{tpu_custom_call.1} parent=1 // pred_region
      _
    $region17: #{tpu_custom_call.1} parent=1 // pred_fallthru
      _
    // Predicated region
    $region18: #{tpu_custom_call.1} parent=1 // pred_check
      _
    $region19: #{tpu_custom_call.1} parent=1 // pred_check_branch
      %26 = sbr.rel (0) target = $region21
    $region20: #{tpu_custom_call.1} parent=1 // pred_region
      _
    $region21: #{tpu_custom_call.1} parent=1 // pred_fallthru
      _
    // Predicated region
    $region22: #{tpu_custom_call.1} parent=1 // pred_check
      _
    $region23: #{tpu_custom_call.1} parent=1 // pred_check_branch
      %28 = sbr.rel (0) target = $region25
    $region24: #{tpu_custom_call.1} parent=1 // pred_region
      _
    $region25: #{tpu_custom_call.1} parent=1 // pred_fallthru
      _
    // Predicated region
    $region26: #{tpu_custom_call.1} parent=1 // pred_check
      _
    $region27: #{tpu_custom_call.1} parent=1 // pred_check_branch
      %30 = sbr.rel (0) target = $region29
    $region28: #{tpu_custom_call.1} parent=1 // pred_region
      _
    $region29: #{tpu_custom_call.1} parent=1 // pred_fallthru
      _
    // Predicated region
    $region30: #{tpu_custom_call.1} parent=1 // pred_check
      _
    $region31: #{tpu_custom_call.1} parent=1 // pred_check_branch
      %32 = sbr.rel (0) target = $region33
    $region32: #{tpu_custom_call.1} parent=1 // pred_region
      _
    $region33: #{tpu_custom_call.1} parent=1 // pred_fallthru
      _
    // Predicated region
    $region34: #{tpu_custom_call.1} parent=1 // pred_check
      _
    $region35: #{tpu_custom_call.1} parent=1 // pred_check_branch
      %34 = sbr.rel (0) target = $region37
    $region36: #{tpu_custom_call.1} parent=1 // pred_region
      _
    $region37: #{tpu_custom_call.1} parent=1 // pred_fallthru
      _
    %v35 = vld [vmem:[%s0] sm:$0xff]
    %v36 = vld [vmem:[%s0 + $0x8] sm:$0xff]
    %v37 = vld [vmem:[%s0 + $0x10] sm:$0xff]
    %v38 = vld [vmem:[%s0 + $0x18] sm:$0xff]
    %v39 = vld [vmem:[%s0 + $0x20] sm:$0xff]
    %v40 = vld [vmem:[%s0 + $0x28] sm:$0xff]
    %v41 = vld [vmem:[%s0 + $0x30] sm:$0xff]
    %v42 = vld [vmem:[%s0 + $0x38] sm:$0xff]
    %v43 = vld [vmem:[%s0 + $0x40] sm:$0xff]
    %v44 = vld [vmem:[%s0 + $0x48] sm:$0xff]
    %v45 = vld [vmem:[%s0 + $0x50] sm:$0xff]
    %v46 = vld [vmem:[%s0 + $0x58] sm:$0xff]
    %v47 = vld [vmem:[%s0 + $0x60] sm:$0xff]
    %v48 = vld [vmem:[%s0 + $0x68] sm:$0xff]
    %v49 = vld [vmem:[%s0 + $0x70] sm:$0xff]
    %v50 = vld [vmem:[%s0 + $0x78] sm:$0xff]
    %v51 = vld [vmem:[%s1] sm:$0xff]
    %v52 = vld [vmem:[%s1 + $0x8] sm:$0xff]
    %v53 = vld [vmem:[%s1 + $0x10] sm:$0xff]
    %v54 = vld [vmem:[%s1 + $0x18] sm:$0xff]
    %v55 = vld [vmem:[%s1 + $0x20] sm:$0xff]
    %v56 = vld [vmem:[%s1 + $0x28] sm:$0xff]
    %v57 = vld [vmem:[%s1 + $0x30] sm:$0xff]
    %v58 = vld [vmem:[%s1 + $0x38] sm:$0xff]
    %v59 = vld [vmem:[%s1 + $0x40] sm:$0xff]
    %v60 = vld [vmem:[%s1 + $0x48] sm:$0xff]
    %v61 = vld [vmem:[%s1 + $0x50] sm:$0xff]
    %v62 = vld [vmem:[%s1 + $0x58] sm:$0xff]
    %v63 = vld [vmem:[%s1 + $0x60] sm:$0xff]
    %v64 = vld [vmem:[%s1 + $0x68] sm:$0xff]
    %v65 = vld [vmem:[%s1 + $0x70] sm:$0xff]
    %v66 = vld [vmem:[%s1 + $0x78] sm:$0xff]
    %v67 = vld [vmem:[%s2] sm:$0xff]
    %v68 = vld [vmem:[%s2 + $0x8] sm:$0xff]
    %v69 = vld [vmem:[%s2 + $0x10] sm:$0xff]
    %v70 = vld [vmem:[%s2 + $0x18] sm:$0xff]
    %v71 = vld [vmem:[%s2 + $0x20] sm:$0xff]
    %v72 = vld [vmem:[%s2 + $0x28] sm:$0xff]
    %v73 = vld [vmem:[%s2 + $0x30] sm:$0xff]
    %v74 = vld [vmem:[%s2 + $0x38] sm:$0xff]
    %v75 = vld [vmem:[%s2 + $0x40] sm:$0xff]
    %v76 = vld [vmem:[%s2 + $0x48] sm:$0xff]
    %v77 = vld [vmem:[%s2 + $0x50] sm:$0xff]
    %v78 = vld [vmem:[%s2 + $0x58] sm:$0xff]
    %v79 = vld [vmem:[%s2 + $0x60] sm:$0xff]
    %v80 = vld [vmem:[%s2 + $0x68] sm:$0xff]
    %v81 = vld [vmem:[%s2 + $0x70] sm:$0xff]
    %v82 = vld [vmem:[%s2 + $0x78] sm:$0xff]
    %84 = vset.pattern.permute.xlu0 0
    %85 = vperm.xlu0 %84, %v67
    %v86 = vpop.permute.xlu0 %85
    %89 = vset.pattern.permute.xlu0 0
    %90 = vperm.xlu0 %89, %v68
    %v91 = vpop.permute.xlu0 %90
    %94 = vset.pattern.permute.xlu0 0
    %95 = vperm.xlu0 %94, %v69
    %v96 = vpop.permute.xlu0 %95
    %99 = vset.pattern.permute.xlu0 0
    %100 = vperm.xlu0 %99, %v70
    %v101 = vpop.permute.xlu0 %100
    %104 = vset.pattern.permute.xlu0 0
    %105 = vperm.xlu0 %104, %v71
    %v106 = vpop.permute.xlu0 %105
    %109 = vset.pattern.permute.xlu0 0
    %110 = vperm.xlu0 %109, %v72
    %v111 = vpop.permute.xlu0 %110
    %114 = vset.pattern.permute.xlu0 0
    %115 = vperm.xlu0 %114, %v73
    %v116 = vpop.permute.xlu0 %115
    %119 = vset.pattern.permute.xlu0 0
    %120 = vperm.xlu0 %119, %v74
    %v121 = vpop.permute.xlu0 %120
    %124 = vset.pattern.permute.xlu0 0
    %125 = vperm.xlu0 %124, %v75
    %v126 = vpop.permute.xlu0 %125
    %129 = vset.pattern.permute.xlu0 0
    %130 = vperm.xlu0 %129, %v76
    %v131 = vpop.permute.xlu0 %130
    %134 = vset.pattern.permute.xlu0 0
    %135 = vperm.xlu0 %134, %v77
    %v136 = vpop.permute.xlu0 %135
    %139 = vset.pattern.permute.xlu0 0
    %140 = vperm.xlu0 %139, %v78
    %v141 = vpop.permute.xlu0 %140
    %144 = vset.pattern.permute.xlu0 0
    %145 = vperm.xlu0 %144, %v79
    %v146 = vpop.permute.xlu0 %145
    %149 = vset.pattern.permute.xlu0 0
    %150 = vperm.xlu0 %149, %v80
    %v151 = vpop.permute.xlu0 %150
    %154 = vset.pattern.permute.xlu0 0
    %155 = vperm.xlu0 %154, %v81
    %v156 = vpop.permute.xlu0 %155
    %159 = vset.pattern.permute.xlu0 0
    %160 = vperm.xlu0 %159, %v82
    %v161 = vpop.permute.xlu0 %160
    %vm163 = vcmask 261120
    %v165 = vsel %vm163, %v51, 0
    %v168 = vsel %vm163, %v52, 0
    %v171 = vsel %vm163, %v53, 0
    %v174 = vsel %vm163, %v54, 0
    %v177 = vsel %vm163, %v55, 0
    %v180 = vsel %vm163, %v56, 0
    %v183 = vsel %vm163, %v57, 0
    %v186 = vsel %vm163, %v58, 0
    %v189 = vsel %vm163, %v59, 0
    %v192 = vsel %vm163, %v60, 0
    %v195 = vsel %vm163, %v61, 0
    %v198 = vsel %vm163, %v62, 0
    %v201 = vsel %vm163, %v63, 0
    %v204 = vsel %vm163, %v64, 0
    %v207 = vsel %vm163, %v65, 0
    %v210 = vsel %vm163, %v66, 0
    %212 = vmatpush.msra.mxu0 0.0
    %213 = vmatpush.msra.mxu0 0.0
    %214 = vmatpush.msra.mxu0 0.0
    %215 = vmatpush.msra.mxu0 0.0
    %216 = vmatpush.msra.mxu0 0.0
    %217 = vmatpush.msra.mxu0 0.0
    %218 = vmatpush.msra.mxu0 0.0
    %219 = vmatpush.msra.mxu0 0.0
    %220 = vmatpush.msra.mxu0 0.0
    %221 = vmatpush.msra.mxu0 0.0
    %222 = vmatpush.msra.mxu0 0.0
    %223 = vmatpush.msra.mxu0 0.0
    %224 = vmatpush.msra.mxu0 %v47
    %225 = vmatpush.msra.mxu0 %v43
    %226 = vmatpush.msra.mxu0 %v39
    %227 = vmatpush.msra.mxu0 %v35
    %228 = vmatmul.f32.gmra.mxu0 %v165
    %v229 = vpop.f32.mrf.mxu0
    %v230 = vadd.f32 %v86, %v229
    %231 = vmatmul.f32.gmra.mxu0 %v168
    %v232 = vpop.f32.mrf.mxu0
    %v233 = vadd.f32 %v91, %v232
    %234 = vmatmul.f32.gmra.mxu0 %v171
    %v235 = vpop.f32.mrf.mxu0
    %v236 = vadd.f32 %v96, %v235
    %237 = vmatmul.f32.gmra.mxu0 %v174
    %v238 = vpop.f32.mrf.mxu0
    %v239 = vadd.f32 %v101, %v238
    %240 = vmatmul.f32.gmra.mxu0 %v177
    %v241 = vpop.f32.mrf.mxu0
    %v242 = vadd.f32 %v106, %v241
    %243 = vmatmul.f32.gmra.mxu0 %v180
    %v244 = vpop.f32.mrf.mxu0
    %v245 = vadd.f32 %v111, %v244
    %246 = vmatmul.f32.gmra.mxu0 %v183
    %v247 = vpop.f32.mrf.mxu0
    %v248 = vadd.f32 %v116, %v247
    %249 = vmatmul.f32.gmra.mxu0 %v186
    %v250 = vpop.f32.mrf.mxu0
    %v251 = vadd.f32 %v121, %v250
    %252 = vmatmul.f32.gmra.mxu0 %v189
    %v253 = vpop.f32.mrf.mxu0
    %v254 = vadd.f32 %v126, %v253
    %255 = vmatmul.f32.gmra.mxu0 %v192
    %v256 = vpop.f32.mrf.mxu0
    %v257 = vadd.f32 %v131, %v256
    %258 = vmatmul.f32.gmra.mxu0 %v195
    %v259 = vpop.f32.mrf.mxu0
    %v260 = vadd.f32 %v136, %v259
    %261 = vmatmul.f32.gmra.mxu0 %v198
    %v262 = vpop.f32.mrf.mxu0
    %v263 = vadd.f32 %v141, %v262
    %264 = vmatmul.f32.gmra.mxu0 %v201
    %v265 = vpop.f32.mrf.mxu0
    %v266 = vadd.f32 %v146, %v265
    %267 = vmatmul.f32.gmra.mxu0 %v204
    %v268 = vpop.f32.mrf.mxu0
    %v269 = vadd.f32 %v151, %v268
    %270 = vmatmul.f32.gmra.mxu0 %v207
    %v271 = vpop.f32.mrf.mxu0
    %v272 = vadd.f32 %v156, %v271
    %273 = vmatmul.f32.gmra.mxu0 %v210
    %v274 = vpop.f32.mrf.mxu0
    %v275 = vadd.f32 %v161, %v274
    %276 = vdwg.mxu0
    %277 = vmatpush.msra.mxu0 0.0
    %278 = vmatpush.msra.mxu0 0.0
    %279 = vmatpush.msra.mxu0 0.0
    %280 = vmatpush.msra.mxu0 0.0
    %281 = vmatpush.msra.mxu0 0.0
    %282 = vmatpush.msra.mxu0 0.0
    %283 = vmatpush.msra.mxu0 0.0
    %284 = vmatpush.msra.mxu0 0.0
    %285 = vmatpush.msra.mxu0 0.0
    %286 = vmatpush.msra.mxu0 0.0
    %287 = vmatpush.msra.mxu0 0.0
    %288 = vmatpush.msra.mxu0 0.0
    %289 = vmatpush.msra.mxu0 %v48
    %290 = vmatpush.msra.mxu0 %v44
    %291 = vmatpush.msra.mxu0 %v40
    %292 = vmatpush.msra.mxu0 %v36
    %293 = vmatmul.f32.gmra.mxu0 %v165
    %v294 = vpop.f32.mrf.mxu0
    %v295 = vadd.f32 %v86, %v294
    %296 = vmatmul.f32.gmra.mxu0 %v168
    %v297 = vpop.f32.mrf.mxu0
    %v298 = vadd.f32 %v91, %v297
    %299 = vmatmul.f32.gmra.mxu0 %v171
    %v300 = vpop.f32.mrf.mxu0
    %v301 = vadd.f32 %v96, %v300
    %302 = vmatmul.f32.gmra.mxu0 %v174
    %v303 = vpop.f32.mrf.mxu0
    %v304 = vadd.f32 %v101, %v303
    %305 = vmatmul.f32.gmra.mxu0 %v177
    %v306 = vpop.f32.mrf.mxu0
    %v307 = vadd.f32 %v106, %v306
    %308 = vmatmul.f32.gmra.mxu0 %v180
    %v309 = vpop.f32.mrf.mxu0
    %v310 = vadd.f32 %v111, %v309
    %311 = vmatmul.f32.gmra.mxu0 %v183
    %v312 = vpop.f32.mrf.mxu0
    %v313 = vadd.f32 %v116, %v312
    %314 = vmatmul.f32.gmra.mxu0 %v186
    %v315 = vpop.f32.mrf.mxu0
    %v316 = vadd.f32 %v121, %v315
    %317 = vmatmul.f32.gmra.mxu0 %v189
    %v318 = vpop.f32.mrf.mxu0
    %v319 = vadd.f32 %v126, %v318
    %320 = vmatmul.f32.gmra.mxu0 %v192
    %v321 = vpop.f32.mrf.mxu0
    %v322 = vadd.f32 %v131, %v321
    %323 = vmatmul.f32.gmra.mxu0 %v195
    %v324 = vpop.f32.mrf.mxu0
    %v325 = vadd.f32 %v136, %v324
    %326 = vmatmul.f32.gmra.mxu0 %v198
    %v327 = vpop.f32.mrf.mxu0
    %v328 = vadd.f32 %v141, %v327
    %329 = vmatmul.f32.gmra.mxu0 %v201
    %v330 = vpop.f32.mrf.mxu0
    %v331 = vadd.f32 %v146, %v330
    %332 = vmatmul.f32.gmra.mxu0 %v204
    %v333 = vpop.f32.mrf.mxu0
    %v334 = vadd.f32 %v151, %v333
    %335 = vmatmul.f32.gmra.mxu0 %v207
    %v336 = vpop.f32.mrf.mxu0
    %v337 = vadd.f32 %v156, %v336
    %338 = vmatmul.f32.gmra.mxu0 %v210
    %v339 = vpop.f32.mrf.mxu0
    %v340 = vadd.f32 %v161, %v339
    %341 = vdwg.mxu0
    %342 = vmatpush.msra.mxu0 0.0
    %343 = vmatpush.msra.mxu0 0.0
    %344 = vmatpush.msra.mxu0 0.0
    %345 = vmatpush.msra.mxu0 0.0
    %346 = vmatpush.msra.mxu0 0.0
    %347 = vmatpush.msra.mxu0 0.0
    %348 = vmatpush.msra.mxu0 0.0
    %349 = vmatpush.msra.mxu0 0.0
    %350 = vmatpush.msra.mxu0 0.0
    %351 = vmatpush.msra.mxu0 0.0
    %352 = vmatpush.msra.mxu0 0.0
    %353 = vmatpush.msra.mxu0 0.0
    %354 = vmatpush.msra.mxu0 %v49
    %355 = vmatpush.msra.mxu0 %v45
    %356 = vmatpush.msra.mxu0 %v41
    %357 = vmatpush.msra.mxu0 %v37
    %358 = vmatmul.f32.gmra.mxu0 %v165
    %v359 = vpop.f32.mrf.mxu0
    %v360 = vadd.f32 %v86, %v359
    %361 = vmatmul.f32.gmra.mxu0 %v168
    %v362 = vpop.f32.mrf.mxu0
    %v363 = vadd.f32 %v91, %v362
    %364 = vmatmul.f32.gmra.mxu0 %v171
    %v365 = vpop.f32.mrf.mxu0
    %v366 = vadd.f32 %v96, %v365
    %367 = vmatmul.f32.gmra.mxu0 %v174
    %v368 = vpop.f32.mrf.mxu0
    %v369 = vadd.f32 %v101, %v368
    %370 = vmatmul.f32.gmra.mxu0 %v177
    %v371 = vpop.f32.mrf.mxu0
    %v372 = vadd.f32 %v106, %v371
    %373 = vmatmul.f32.gmra.mxu0 %v180
    %v374 = vpop.f32.mrf.mxu0
    %v375 = vadd.f32 %v111, %v374
    %376 = vmatmul.f32.gmra.mxu0 %v183
    %v377 = vpop.f32.mrf.mxu0
    %v378 = vadd.f32 %v116, %v377
    %379 = vmatmul.f32.gmra.mxu0 %v186
    %v380 = vpop.f32.mrf.mxu0
    %v381 = vadd.f32 %v121, %v380
    %382 = vmatmul.f32.gmra.mxu0 %v189
    %v383 = vpop.f32.mrf.mxu0
    %v384 = vadd.f32 %v126, %v383
    %385 = vmatmul.f32.gmra.mxu0 %v192
    %v386 = vpop.f32.mrf.mxu0
    %v387 = vadd.f32 %v131, %v386
    %388 = vmatmul.f32.gmra.mxu0 %v195
    %v389 = vpop.f32.mrf.mxu0
    %v390 = vadd.f32 %v136, %v389
    %391 = vmatmul.f32.gmra.mxu0 %v198
    %v392 = vpop.f32.mrf.mxu0
    %v393 = vadd.f32 %v141, %v392
    %394 = vmatmul.f32.gmra.mxu0 %v201
    %v395 = vpop.f32.mrf.mxu0
    %v396 = vadd.f32 %v146, %v395
    %397 = vmatmul.f32.gmra.mxu0 %v204
    %v398 = vpop.f32.mrf.mxu0
    %v399 = vadd.f32 %v151, %v398
    %400 = vmatmul.f32.gmra.mxu0 %v207
    %v401 = vpop.f32.mrf.mxu0
    %v402 = vadd.f32 %v156, %v401
    %403 = vmatmul.f32.gmra.mxu0 %v210
    %v404 = vpop.f32.mrf.mxu0
    %v405 = vadd.f32 %v161, %v404
    %406 = vdwg.mxu0
    %407 = vmatpush.msra.mxu0 0.0
    %408 = vmatpush.msra.mxu0 0.0
    %409 = vmatpush.msra.mxu0 0.0
    %410 = vmatpush.msra.mxu0 0.0
    %411 = vmatpush.msra.mxu0 0.0
    %412 = vmatpush.msra.mxu0 0.0
    %413 = vmatpush.msra.mxu0 0.0
    %414 = vmatpush.msra.mxu0 0.0
    %415 = vmatpush.msra.mxu0 0.0
    %416 = vmatpush.msra.mxu0 0.0
    %417 = vmatpush.msra.mxu0 0.0
    %418 = vmatpush.msra.mxu0 0.0
    %419 = vmatpush.msra.mxu0 %v50
    %420 = vmatpush.msra.mxu0 %v46
    %421 = vmatpush.msra.mxu0 %v42
    %422 = vmatpush.msra.mxu0 %v38
    %423 = vmatmul.f32.gmra.mxu0 %v165
    %v424 = vpop.f32.mrf.mxu0
    %v425 = vadd.f32 %v86, %v424
    %426 = vmatmul.f32.gmra.mxu0 %v168
    %v427 = vpop.f32.mrf.mxu0
    %v428 = vadd.f32 %v91, %v427
    %429 = vmatmul.f32.gmra.mxu0 %v171
    %v430 = vpop.f32.mrf.mxu0
    %v431 = vadd.f32 %v96, %v430
    %432 = vmatmul.f32.gmra.mxu0 %v174
    %v433 = vpop.f32.mrf.mxu0
    %v434 = vadd.f32 %v101, %v433
    %435 = vmatmul.f32.gmra.mxu0 %v177
    %v436 = vpop.f32.mrf.mxu0
    %v437 = vadd.f32 %v106, %v436
    %438 = vmatmul.f32.gmra.mxu0 %v180
    %v439 = vpop.f32.mrf.mxu0
    %v440 = vadd.f32 %v111, %v439
    %441 = vmatmul.f32.gmra.mxu0 %v183
    %v442 = vpop.f32.mrf.mxu0
    %v443 = vadd.f32 %v116, %v442
    %444 = vmatmul.f32.gmra.mxu0 %v186
    %v445 = vpop.f32.mrf.mxu0
    %v446 = vadd.f32 %v121, %v445
    %447 = vmatmul.f32.gmra.mxu0 %v189
    %v448 = vpop.f32.mrf.mxu0
    %v449 = vadd.f32 %v126, %v448
    %450 = vmatmul.f32.gmra.mxu0 %v192
    %v451 = vpop.f32.mrf.mxu0
    %v452 = vadd.f32 %v131, %v451
    %453 = vmatmul.f32.gmra.mxu0 %v195
    %v454 = vpop.f32.mrf.mxu0
    %v455 = vadd.f32 %v136, %v454
    %456 = vmatmul.f32.gmra.mxu0 %v198
    %v457 = vpop.f32.mrf.mxu0
    %v458 = vadd.f32 %v141, %v457
    %459 = vmatmul.f32.gmra.mxu0 %v201
    %v460 = vpop.f32.mrf.mxu0
    %v461 = vadd.f32 %v146, %v460
    %462 = vmatmul.f32.gmra.mxu0 %v204
    %v463 = vpop.f32.mrf.mxu0
    %v464 = vadd.f32 %v151, %v463
    %465 = vmatmul.f32.gmra.mxu0 %v207
    %v466 = vpop.f32.mrf.mxu0
    %v467 = vadd.f32 %v156, %v466
    %468 = vmatmul.f32.gmra.mxu0 %v210
    %v469 = vpop.f32.mrf.mxu0
    %v470 = vadd.f32 %v161, %v469
    %471 = vdwg.mxu0
    %v472 = vmax.f32 %v230, 0.0
    %v473 = vmax.f32 %v295, 0.0
    %v474 = vmax.f32 %v360, 0.0
    %v475 = vmax.f32 %v425, 0.0
    %v476 = vmax.f32 %v233, 0.0
    %v477 = vmax.f32 %v298, 0.0
    %v478 = vmax.f32 %v363, 0.0
    %v479 = vmax.f32 %v428, 0.0
    %v480 = vmax.f32 %v236, 0.0
    %v481 = vmax.f32 %v301, 0.0
    %v482 = vmax.f32 %v366, 0.0
    %v483 = vmax.f32 %v431, 0.0
    %v484 = vmax.f32 %v239, 0.0
    %v485 = vmax.f32 %v304, 0.0
    %v486 = vmax.f32 %v369, 0.0
    %v487 = vmax.f32 %v434, 0.0
    %v488 = vmax.f32 %v242, 0.0
    %v489 = vmax.f32 %v307, 0.0
    %v490 = vmax.f32 %v372, 0.0
    %v491 = vmax.f32 %v437, 0.0
    %v492 = vmax.f32 %v245, 0.0
    %v493 = vmax.f32 %v310, 0.0
    %v494 = vmax.f32 %v375, 0.0
    %v495 = vmax.f32 %v440, 0.0
    %v496 = vmax.f32 %v248, 0.0
    %v497 = vmax.f32 %v313, 0.0
    %v498 = vmax.f32 %v378, 0.0
    %v499 = vmax.f32 %v443, 0.0
    %v500 = vmax.f32 %v251, 0.0
    %v501 = vmax.f32 %v316, 0.0
    %v502 = vmax.f32 %v381, 0.0
    %v503 = vmax.f32 %v446, 0.0
    %v504 = vmax.f32 %v254, 0.0
    %v505 = vmax.f32 %v319, 0.0
    %v506 = vmax.f32 %v384, 0.0
    %v507 = vmax.f32 %v449, 0.0
    %v508 = vmax.f32 %v257, 0.0
    %v509 = vmax.f32 %v322, 0.0
    %v510 = vmax.f32 %v387, 0.0
    %v511 = vmax.f32 %v452, 0.0
    %v512 = vmax.f32 %v260, 0.0
    %v513 = vmax.f32 %v325, 0.0
    %v514 = vmax.f32 %v390, 0.0
    %v515 = vmax.f32 %v455, 0.0
    %v516 = vmax.f32 %v263, 0.0
    %v517 = vmax.f32 %v328, 0.0
    %v518 = vmax.f32 %v393, 0.0
    %v519 = vmax.f32 %v458, 0.0
    %v520 = vmax.f32 %v266, 0.0
    %v521 = vmax.f32 %v331, 0.0
    %v522 = vmax.f32 %v396, 0.0
    %v523 = vmax.f32 %v461, 0.0
    %v524 = vmax.f32 %v269, 0.0
    %v525 = vmax.f32 %v334, 0.0
    %v526 = vmax.f32 %v399, 0.0
    %v527 = vmax.f32 %v464, 0.0
    %v528 = vmax.f32 %v272, 0.0
    %v529 = vmax.f32 %v337, 0.0
    %v530 = vmax.f32 %v402, 0.0
    %v531 = vmax.f32 %v467, 0.0
    %v532 = vmax.f32 %v275, 0.0
    %v533 = vmax.f32 %v340, 0.0
    %v534 = vmax.f32 %v405, 0.0
    %v535 = vmax.f32 %v470, 0.0
    %v536 = vld [vmem:[%s3] sm:$0xff]
    %v537 = vld [vmem:[%s3 + $0x8] sm:$0xff]
    %v538 = vld [vmem:[%s3 + $0x10] sm:$0xff]
    %v539 = vld [vmem:[%s3 + $0x18] sm:$0xff]
    %v540 = vld [vmem:[%s3 + $0x20] sm:$0xff]
    %v541 = vld [vmem:[%s3 + $0x28] sm:$0xff]
    %v542 = vld [vmem:[%s3 + $0x30] sm:$0xff]
    %v543 = vld [vmem:[%s3 + $0x38] sm:$0xff]
    %v544 = vld [vmem:[%s4] sm:$0xff]
    %v545 = vld [vmem:[%s4 + $0x8] sm:$0xff]
    %v546 = vld [vmem:[%s4 + $0x10] sm:$0xff]
    %v547 = vld [vmem:[%s4 + $0x18] sm:$0xff]
    %v548 = vld [vmem:[%s4 + $0x20] sm:$0xff]
    %v549 = vld [vmem:[%s4 + $0x28] sm:$0xff]
    %v550 = vld [vmem:[%s4 + $0x30] sm:$0xff]
    %v551 = vld [vmem:[%s4 + $0x38] sm:$0xff]
    %553 = vset.pattern.permute.xlu0 0
    %554 = vperm.xlu0 %553, %v544
    %v555 = vpop.permute.xlu0 %554
    %558 = vset.pattern.permute.xlu0 0
    %559 = vperm.xlu0 %558, %v545
    %v560 = vpop.permute.xlu0 %559
    %563 = vset.pattern.permute.xlu0 0
    %564 = vperm.xlu0 %563, %v546
    %v565 = vpop.permute.xlu0 %564
    %568 = vset.pattern.permute.xlu0 0
    %569 = vperm.xlu0 %568, %v547
    %v570 = vpop.permute.xlu0 %569
    %573 = vset.pattern.permute.xlu0 0
    %574 = vperm.xlu0 %573, %v548
    %v575 = vpop.permute.xlu0 %574
    %578 = vset.pattern.permute.xlu0 0
    %579 = vperm.xlu0 %578, %v549
    %v580 = vpop.permute.xlu0 %579
    %583 = vset.pattern.permute.xlu0 0
    %584 = vperm.xlu0 %583, %v550
    %v585 = vpop.permute.xlu0 %584
    %588 = vset.pattern.permute.xlu0 0
    %589 = vperm.xlu0 %588, %v551
    %v590 = vpop.permute.xlu0 %589
    %592 = vmatpush.msra.mxu0 %v532
    %593 = vmatpush.msra.mxu0 %v528
    %594 = vmatpush.msra.mxu0 %v524
    %595 = vmatpush.msra.mxu0 %v520
    %596 = vmatpush.msra.mxu0 %v516
    %597 = vmatpush.msra.mxu0 %v512
    %598 = vmatpush.msra.mxu0 %v508
    %599 = vmatpush.msra.mxu0 %v504
    %600 = vmatpush.msra.mxu0 %v500
    %601 = vmatpush.msra.mxu0 %v496
    %602 = vmatpush.msra.mxu0 %v492
    %603 = vmatpush.msra.mxu0 %v488
    %604 = vmatpush.msra.mxu0 %v484
    %605 = vmatpush.msra.mxu0 %v480
    %606 = vmatpush.msra.mxu0 %v476
    %607 = vmatpush.msra.mxu0 %v472
    %608 = vmatmul.f32.gmra.mxu0 %v536
    %v609 = vpop.f32.mrf.mxu0
    %v610 = vadd.f32 %v555, %v609
    %611 = vmatmul.f32.gmra.mxu0 %v537
    %v612 = vpop.f32.mrf.mxu0
    %v613 = vadd.f32 %v560, %v612
    %614 = vmatmul.f32.gmra.mxu0 %v538
    %v615 = vpop.f32.mrf.mxu0
    %v616 = vadd.f32 %v565, %v615
    %617 = vmatmul.f32.gmra.mxu0 %v539
    %v618 = vpop.f32.mrf.mxu0
    %v619 = vadd.f32 %v570, %v618
    %620 = vmatmul.f32.gmra.mxu0 %v540
    %v621 = vpop.f32.mrf.mxu0
    %v622 = vadd.f32 %v575, %v621
    %623 = vmatmul.f32.gmra.mxu0 %v541
    %v624 = vpop.f32.mrf.mxu0
    %v625 = vadd.f32 %v580, %v624
    %626 = vmatmul.f32.gmra.mxu0 %v542
    %v627 = vpop.f32.mrf.mxu0
    %v628 = vadd.f32 %v585, %v627
    %629 = vmatmul.f32.gmra.mxu0 %v543
    %v630 = vpop.f32.mrf.mxu0
    %v631 = vadd.f32 %v590, %v630
    %632 = vdwg.mxu0
    %633 = vmatpush.msra.mxu0 %v533
    %634 = vmatpush.msra.mxu0 %v529
    %635 = vmatpush.msra.mxu0 %v525
    %636 = vmatpush.msra.mxu0 %v521
    %637 = vmatpush.msra.mxu0 %v517
    %638 = vmatpush.msra.mxu0 %v513
    %639 = vmatpush.msra.mxu0 %v509
    %640 = vmatpush.msra.mxu0 %v505
    %641 = vmatpush.msra.mxu0 %v501
    %642 = vmatpush.msra.mxu0 %v497
    %643 = vmatpush.msra.mxu0 %v493
    %644 = vmatpush.msra.mxu0 %v489
    %645 = vmatpush.msra.mxu0 %v485
    %646 = vmatpush.msra.mxu0 %v481
    %647 = vmatpush.msra.mxu0 %v477
    %648 = vmatpush.msra.mxu0 %v473
    %649 = vmatmul.f32.gmra.mxu0 %v536
    %v650 = vpop.f32.mrf.mxu0
    %v651 = vadd.f32 %v555, %v650
    %652 = vmatmul.f32.gmra.mxu0 %v537
    %v653 = vpop.f32.mrf.mxu0
    %v654 = vadd.f32 %v560, %v653
    %655 = vmatmul.f32.gmra.mxu0 %v538
    %v656 = vpop.f32.mrf.mxu0
    %v657 = vadd.f32 %v565, %v656
    %658 = vmatmul.f32.gmra.mxu0 %v539
    %v659 = vpop.f32.mrf.mxu0
    %v660 = vadd.f32 %v570, %v659
    %661 = vmatmul.f32.gmra.mxu0 %v540
    %v662 = vpop.f32.mrf.mxu0
    %v663 = vadd.f32 %v575, %v662
    %664 = vmatmul.f32.gmra.mxu0 %v541
    %v665 = vpop.f32.mrf.mxu0
    %v666 = vadd.f32 %v580, %v665
    %667 = vmatmul.f32.gmra.mxu0 %v542
    %v668 = vpop.f32.mrf.mxu0
    %v669 = vadd.f32 %v585, %v668
    %670 = vmatmul.f32.gmra.mxu0 %v543
    %v671 = vpop.f32.mrf.mxu0
    %v672 = vadd.f32 %v590, %v671
    %673 = vdwg.mxu0
    %674 = vmatpush.msra.mxu0 %v534
    %675 = vmatpush.msra.mxu0 %v530
    %676 = vmatpush.msra.mxu0 %v526
    %677 = vmatpush.msra.mxu0 %v522
    %678 = vmatpush.msra.mxu0 %v518
    %679 = vmatpush.msra.mxu0 %v514
    %680 = vmatpush.msra.mxu0 %v510
    %681 = vmatpush.msra.mxu0 %v506
    %682 = vmatpush.msra.mxu0 %v502
    %683 = vmatpush.msra.mxu0 %v498
    %684 = vmatpush.msra.mxu0 %v494
    %685 = vmatpush.msra.mxu0 %v490
    %686 = vmatpush.msra.mxu0 %v486
    %687 = vmatpush.msra.mxu0 %v482
    %688 = vmatpush.msra.mxu0 %v478
    %689 = vmatpush.msra.mxu0 %v474
    %690 = vmatmul.f32.gmra.mxu0 %v536
    %v691 = vpop.f32.mrf.mxu0
    %v692 = vadd.f32 %v555, %v691
    %693 = vmatmul.f32.gmra.mxu0 %v537
    %v694 = vpop.f32.mrf.mxu0
    %v695 = vadd.f32 %v560, %v694
    %696 = vmatmul.f32.gmra.mxu0 %v538
    %v697 = vpop.f32.mrf.mxu0
    %v698 = vadd.f32 %v565, %v697
    %699 = vmatmul.f32.gmra.mxu0 %v539
    %v700 = vpop.f32.mrf.mxu0
    %v701 = vadd.f32 %v570, %v700
    %702 = vmatmul.f32.gmra.mxu0 %v540
    %v703 = vpop.f32.mrf.mxu0
    %v704 = vadd.f32 %v575, %v703
    %705 = vmatmul.f32.gmra.mxu0 %v541
    %v706 = vpop.f32.mrf.mxu0
    %v707 = vadd.f32 %v580, %v706
    %708 = vmatmul.f32.gmra.mxu0 %v542
    %v709 = vpop.f32.mrf.mxu0
    %v710 = vadd.f32 %v585, %v709
    %711 = vmatmul.f32.gmra.mxu0 %v543
    %v712 = vpop.f32.mrf.mxu0
    %v713 = vadd.f32 %v590, %v712
    %714 = vdwg.mxu0
    %715 = vmatpush.msra.mxu0 %v535
    %716 = vmatpush.msra.mxu0 %v531
    %717 = vmatpush.msra.mxu0 %v527
    %718 = vmatpush.msra.mxu0 %v523
    %719 = vmatpush.msra.mxu0 %v519
    %720 = vmatpush.msra.mxu0 %v515
    %721 = vmatpush.msra.mxu0 %v511
    %722 = vmatpush.msra.mxu0 %v507
    %723 = vmatpush.msra.mxu0 %v503
    %724 = vmatpush.msra.mxu0 %v499
    %725 = vmatpush.msra.mxu0 %v495
    %726 = vmatpush.msra.mxu0 %v491
    %727 = vmatpush.msra.mxu0 %v487
    %728 = vmatpush.msra.mxu0 %v483
    %729 = vmatpush.msra.mxu0 %v479
    %730 = vmatpush.msra.mxu0 %v475
    %731 = vmatmul.f32.gmra.mxu0 %v536
    %v732 = vpop.f32.mrf.mxu0
    %v733 = vadd.f32 %v555, %v732
    %734 = vmatmul.f32.gmra.mxu0 %v537
    %v735 = vpop.f32.mrf.mxu0
    %v736 = vadd.f32 %v560, %v735
    %737 = vmatmul.f32.gmra.mxu0 %v538
    %v738 = vpop.f32.mrf.mxu0
    %v739 = vadd.f32 %v565, %v738
    %740 = vmatmul.f32.gmra.mxu0 %v539
    %v741 = vpop.f32.mrf.mxu0
    %v742 = vadd.f32 %v570, %v741
    %743 = vmatmul.f32.gmra.mxu0 %v540
    %v744 = vpop.f32.mrf.mxu0
    %v745 = vadd.f32 %v575, %v744
    %746 = vmatmul.f32.gmra.mxu0 %v541
    %v747 = vpop.f32.mrf.mxu0
    %v748 = vadd.f32 %v580, %v747
    %749 = vmatmul.f32.gmra.mxu0 %v542
    %v750 = vpop.f32.mrf.mxu0
    %v751 = vadd.f32 %v585, %v750
    %752 = vmatmul.f32.gmra.mxu0 %v543
    %v753 = vpop.f32.mrf.mxu0
    %v754 = vadd.f32 %v590, %v753
    %755 = vdwg.mxu0
    %v756 = vmax.f32 %v610, 0.0
    %v757 = vmax.f32 %v651, 0.0
    %v758 = vmax.f32 %v692, 0.0
    %v759 = vmax.f32 %v733, 0.0
    %v760 = vmax.f32 %v613, 0.0
    %v761 = vmax.f32 %v654, 0.0
    %v762 = vmax.f32 %v695, 0.0
    %v763 = vmax.f32 %v736, 0.0
    %v764 = vmax.f32 %v616, 0.0
    %v765 = vmax.f32 %v657, 0.0
    %v766 = vmax.f32 %v698, 0.0
    %v767 = vmax.f32 %v739, 0.0
    %v768 = vmax.f32 %v619, 0.0
    %v769 = vmax.f32 %v660, 0.0
    %v770 = vmax.f32 %v701, 0.0
    %v771 = vmax.f32 %v742, 0.0
    %v772 = vmax.f32 %v622, 0.0
    %v773 = vmax.f32 %v663, 0.0
    %v774 = vmax.f32 %v704, 0.0
    %v775 = vmax.f32 %v745, 0.0
    %v776 = vmax.f32 %v625, 0.0
    %v777 = vmax.f32 %v666, 0.0
    %v778 = vmax.f32 %v707, 0.0
    %v779 = vmax.f32 %v748, 0.0
    %v780 = vmax.f32 %v628, 0.0
    %v781 = vmax.f32 %v669, 0.0
    %v782 = vmax.f32 %v710, 0.0
    %v783 = vmax.f32 %v751, 0.0
    %v784 = vmax.f32 %v631, 0.0
    %v785 = vmax.f32 %v672, 0.0
    %v786 = vmax.f32 %v713, 0.0
    %v787 = vmax.f32 %v754, 0.0
    %v788 = vld [vmem:[%s5] sm:$0xff]
    %v789 = vld [vmem:[%s5 + $0x8] sm:$0xff]
    %v790 = vld [vmem:[%s5 + $0x10] sm:$0xff]
    %v791 = vld [vmem:[%s5 + $0x18] sm:$0xff]
    %v792 = vld [vmem:[%s6] sm:$0xff]
    %v793 = vld [vmem:[%s6 + $0x8] sm:$0xff]
    %v794 = vld [vmem:[%s6 + $0x10] sm:$0xff]
    %v795 = vld [vmem:[%s6 + $0x18] sm:$0xff]
    %797 = vset.pattern.permute.xlu0 0
    %798 = vperm.xlu0 %797, %v792
    %v799 = vpop.permute.xlu0 %798
    %802 = vset.pattern.permute.xlu0 0
    %803 = vperm.xlu0 %802, %v793
    %v804 = vpop.permute.xlu0 %803
    %807 = vset.pattern.permute.xlu0 0
    %808 = vperm.xlu0 %807, %v794
    %v809 = vpop.permute.xlu0 %808
    %812 = vset.pattern.permute.xlu0 0
    %813 = vperm.xlu0 %812, %v795
    %v814 = vpop.permute.xlu0 %813
    %vm816 = vcmask 523264
    %v818 = vsel %vm816, %v788, 0
    %v821 = vsel %vm816, %v789, 0
    %v824 = vsel %vm816, %v790, 0
    %v827 = vsel %vm816, %v791, 0
    %829 = vmatpush.msra.mxu0 0.0
    %830 = vmatpush.msra.mxu0 0.0
    %831 = vmatpush.msra.mxu0 0.0
    %832 = vmatpush.msra.mxu0 0.0
    %833 = vmatpush.msra.mxu0 0.0
    %834 = vmatpush.msra.mxu0 0.0
    %835 = vmatpush.msra.mxu0 0.0
    %836 = vmatpush.msra.mxu0 0.0
    %837 = vmatpush.msra.mxu0 %v784
    %838 = vmatpush.msra.mxu0 %v780
    %839 = vmatpush.msra.mxu0 %v776
    %840 = vmatpush.msra.mxu0 %v772
    %841 = vmatpush.msra.mxu0 %v768
    %842 = vmatpush.msra.mxu0 %v764
    %843 = vmatpush.msra.mxu0 %v760
    %844 = vmatpush.msra.mxu0 %v756
    %845 = vmatmul.f32.gmra.mxu0 %v818
    %v846 = vpop.f32.mrf.mxu0
    %v847 = vadd.f32 %v799, %v846
    %848 = vmatmul.f32.gmra.mxu0 %v821
    %v849 = vpop.f32.mrf.mxu0
    %v850 = vadd.f32 %v804, %v849
    %851 = vmatmul.f32.gmra.mxu0 %v824
    %v852 = vpop.f32.mrf.mxu0
    %v853 = vadd.f32 %v809, %v852
    %854 = vmatmul.f32.gmra.mxu0 %v827
    %v855 = vpop.f32.mrf.mxu0
    %v856 = vadd.f32 %v814, %v855
    %857 = vdwg.mxu0
    %858 = vmatpush.msra.mxu0 0.0
    %859 = vmatpush.msra.mxu0 0.0
    %860 = vmatpush.msra.mxu0 0.0
    %861 = vmatpush.msra.mxu0 0.0
    %862 = vmatpush.msra.mxu0 0.0
    %863 = vmatpush.msra.mxu0 0.0
    %864 = vmatpush.msra.mxu0 0.0
    %865 = vmatpush.msra.mxu0 0.0
    %866 = vmatpush.msra.mxu0 %v785
    %867 = vmatpush.msra.mxu0 %v781
    %868 = vmatpush.msra.mxu0 %v777
    %869 = vmatpush.msra.mxu0 %v773
    %870 = vmatpush.msra.mxu0 %v769
    %871 = vmatpush.msra.mxu0 %v765
    %872 = vmatpush.msra.mxu0 %v761
    %873 = vmatpush.msra.mxu0 %v757
    %874 = vmatmul.f32.gmra.mxu0 %v818
    %v875 = vpop.f32.mrf.mxu0
    %v876 = vadd.f32 %v799, %v875
    %877 = vmatmul.f32.gmra.mxu0 %v821
    %v878 = vpop.f32.mrf.mxu0
    %v879 = vadd.f32 %v804, %v878
    %880 = vmatmul.f32.gmra.mxu0 %v824
    %v881 = vpop.f32.mrf.mxu0
    %v882 = vadd.f32 %v809, %v881
    %883 = vmatmul.f32.gmra.mxu0 %v827
    %v884 = vpop.f32.mrf.mxu0
    %v885 = vadd.f32 %v814, %v884
    %886 = vdwg.mxu0
    %887 = vmatpush.msra.mxu0 0.0
    %888 = vmatpush.msra.mxu0 0.0
    %889 = vmatpush.msra.mxu0 0.0
    %890 = vmatpush.msra.mxu0 0.0
    %891 = vmatpush.msra.mxu0 0.0
    %892 = vmatpush.msra.mxu0 0.0
    %893 = vmatpush.msra.mxu0 0.0
    %894 = vmatpush.msra.mxu0 0.0
    %895 = vmatpush.msra.mxu0 %v786
    %896 = vmatpush.msra.mxu0 %v782
    %897 = vmatpush.msra.mxu0 %v778
    %898 = vmatpush.msra.mxu0 %v774
    %899 = vmatpush.msra.mxu0 %v770
    %900 = vmatpush.msra.mxu0 %v766
    %901 = vmatpush.msra.mxu0 %v762
    %902 = vmatpush.msra.mxu0 %v758
    %903 = vmatmul.f32.gmra.mxu0 %v818
    %v904 = vpop.f32.mrf.mxu0
    %v905 = vadd.f32 %v799, %v904
    %906 = vmatmul.f32.gmra.mxu0 %v821
    %v907 = vpop.f32.mrf.mxu0
    %v908 = vadd.f32 %v804, %v907
    %909 = vmatmul.f32.gmra.mxu0 %v824
    %v910 = vpop.f32.mrf.mxu0
    %v911 = vadd.f32 %v809, %v910
    %912 = vmatmul.f32.gmra.mxu0 %v827
    %v913 = vpop.f32.mrf.mxu0
    %v914 = vadd.f32 %v814, %v913
    %915 = vdwg.mxu0
    %916 = vmatpush.msra.mxu0 0.0
    %917 = vmatpush.msra.mxu0 0.0
    %918 = vmatpush.msra.mxu0 0.0
    %919 = vmatpush.msra.mxu0 0.0
    %920 = vmatpush.msra.mxu0 0.0
    %921 = vmatpush.msra.mxu0 0.0
    %922 = vmatpush.msra.mxu0 0.0
    %923 = vmatpush.msra.mxu0 0.0
    %924 = vmatpush.msra.mxu0 %v787
    %925 = vmatpush.msra.mxu0 %v783
    %926 = vmatpush.msra.mxu0 %v779
    %927 = vmatpush.msra.mxu0 %v775
    %928 = vmatpush.msra.mxu0 %v771
    %929 = vmatpush.msra.mxu0 %v767
    %930 = vmatpush.msra.mxu0 %v763
    %931 = vmatpush.msra.mxu0 %v759
    %932 = vmatmul.f32.gmra.mxu0 %v818
    %v933 = vpop.f32.mrf.mxu0
    %v934 = vadd.f32 %v799, %v933
    %935 = vmatmul.f32.gmra.mxu0 %v821
    %v936 = vpop.f32.mrf.mxu0
    %v937 = vadd.f32 %v804, %v936
    %938 = vmatmul.f32.gmra.mxu0 %v824
    %v939 = vpop.f32.mrf.mxu0
    %v940 = vadd.f32 %v809, %v939
    %941 = vmatmul.f32.gmra.mxu0 %v827
    %v942 = vpop.f32.mrf.mxu0
    %v943 = vadd.f32 %v814, %v942
    %944 = vdwg.mxu0
    %v945 = vmax.f32 %v847, 0.0
    %v946 = vmax.f32 %v876, 0.0
    %v947 = vmax.f32 %v905, 0.0
    %v948 = vmax.f32 %v934, 0.0
    %v949 = vmax.f32 %v850, 0.0
    %v950 = vmax.f32 %v879, 0.0
    %v951 = vmax.f32 %v908, 0.0
    %v952 = vmax.f32 %v937, 0.0
    %v953 = vmax.f32 %v853, 0.0
    %v954 = vmax.f32 %v882, 0.0
    %v955 = vmax.f32 %v911, 0.0
    %v956 = vmax.f32 %v940, 0.0
    %v957 = vmax.f32 %v856, 0.0
    %v958 = vmax.f32 %v885, 0.0
    %v959 = vmax.f32 %v914, 0.0
    %v960 = vmax.f32 %v943, 0.0
    %v961 = vld [vmem:[%s7] sm:$0x1]
    %v962 = vld [vmem:[#allocation2] sm:$0x1]
    %964 = vset.pattern.permute.xlu0 0
    %965 = vperm.xlu0 %964, %v962
    %v966 = vpop.permute.xlu0 %965
    %v968 = vperm.slane %v966, 0
    %v970 = vsel %vm163, %v961, 0
    %972 = vmatpush.msra.mxu0 0.0
    %973 = vmatpush.msra.mxu0 0.0
    %974 = vmatpush.msra.mxu0 0.0
    %975 = vmatpush.msra.mxu0 0.0
    %976 = vmatpush.msra.mxu0 0.0
    %977 = vmatpush.msra.mxu0 0.0
    %978 = vmatpush.msra.mxu0 0.0
    %979 = vmatpush.msra.mxu0 0.0
    %980 = vmatpush.msra.mxu0 0.0
    %981 = vmatpush.msra.mxu0 0.0
    %982 = vmatpush.msra.mxu0 0.0
    %983 = vmatpush.msra.mxu0 0.0
    %984 = vmatpush.msra.mxu0 %v957
    %985 = vmatpush.msra.mxu0 %v953
    %986 = vmatpush.msra.mxu0 %v949
    %987 = vmatpush.msra.mxu0 %v945
    %988 = vmatmul.f32.gmra.mxu0 %v970
    %v989 = vpop.f32.mrf.mxu0
    %v990 = vadd.f32 %v968, %v989
    %991 = vdwg.mxu0
    %992 = vmatpush.msra.mxu0 0.0
    %993 = vmatpush.msra.mxu0 0.0
    %994 = vmatpush.msra.mxu0 0.0
    %995 = vmatpush.msra.mxu0 0.0
    %996 = vmatpush.msra.mxu0 0.0
    %997 = vmatpush.msra.mxu0 0.0
    %998 = vmatpush.msra.mxu0 0.0
    %999 = vmatpush.msra.mxu0 0.0
    %1000 = vmatpush.msra.mxu0 0.0
    %1001 = vmatpush.msra.mxu0 0.0
    %1002 = vmatpush.msra.mxu0 0.0
    %1003 = vmatpush.msra.mxu0 0.0
    %1004 = vmatpush.msra.mxu0 %v958
    %1005 = vmatpush.msra.mxu0 %v954
    %1006 = vmatpush.msra.mxu0 %v950
    %1007 = vmatpush.msra.mxu0 %v946
    %1008 = vmatmul.f32.gmra.mxu0 %v970
    %v1009 = vpop.f32.mrf.mxu0
    %v1010 = vadd.f32 %v968, %v1009
    %1011 = vdwg.mxu0
    %1012 = vmatpush.msra.mxu0 0.0
    %1013 = vmatpush.msra.mxu0 0.0
    %1014 = vmatpush.msra.mxu0 0.0
    %1015 = vmatpush.msra.mxu0 0.0
    %1016 = vmatpush.msra.mxu0 0.0
    %1017 = vmatpush.msra.mxu0 0.0
    %1018 = vmatpush.msra.mxu0 0.0
    %1019 = vmatpush.msra.mxu0 0.0
    %1020 = vmatpush.msra.mxu0 0.0
    %1021 = vmatpush.msra.mxu0 0.0
    %1022 = vmatpush.msra.mxu0 0.0
    %1023 = vmatpush.msra.mxu0 0.0
    %1024 = vmatpush.msra.mxu0 %v959
    %1025 = vmatpush.msra.mxu0 %v955
    %1026 = vmatpush.msra.mxu0 %v951
    %1027 = vmatpush.msra.mxu0 %v947
    %1028 = vmatmul.f32.gmra.mxu0 %v970
    %v1029 = vpop.f32.mrf.mxu0
    %v1030 = vadd.f32 %v968, %v1029
    %1031 = vdwg.mxu0
    %1032 = vmatpush.msra.mxu0 0.0
    %1033 = vmatpush.msra.mxu0 0.0
    %1034 = vmatpush.msra.mxu0 0.0
    %1035 = vmatpush.msra.mxu0 0.0
    %1036 = vmatpush.msra.mxu0 0.0
    %1037 = vmatpush.msra.mxu0 0.0
    %1038 = vmatpush.msra.mxu0 0.0
    %1039 = vmatpush.msra.mxu0 0.0
    %1040 = vmatpush.msra.mxu0 0.0
    %1041 = vmatpush.msra.mxu0 0.0
    %1042 = vmatpush.msra.mxu0 0.0
    %1043 = vmatpush.msra.mxu0 0.0
    %1044 = vmatpush.msra.mxu0 %v960
    %1045 = vmatpush.msra.mxu0 %v956
    %1046 = vmatpush.msra.mxu0 %v952
    %1047 = vmatpush.msra.mxu0 %v948
    %1048 = vmatmul.f32.gmra.mxu0 %v970
    %v1049 = vpop.f32.mrf.mxu0
    %v1050 = vadd.f32 %v968, %v1049
    %1051 = vdwg.mxu0
    %v1052 = vtanh.pop %v990
    %v1053 = vtanh.pop %v1010
    %v1054 = vtanh.pop %v1030
    %v1055 = vtanh.pop %v1050
    %v1060 = vrot.slane %v1053, 7
    %v1061 = vrot.slane %v1054, 6
    %v1062 = vrot.slane %v1055, 5
    %vm1063 = vcmask 1040384
    %v1064 = vsel %vm1063, %v1052, %v1060
    %vm1065 = vcmask 1042434
    %v1066 = vsel %vm1065, %v1061, %v1062
    %vm1067 = vcmask 1041408
    %v1068 = vsel %vm1067, %v1064, %v1066
    %v1070 = vlaneseq
    %vm1071 = vcmp.ge.s32.totalorder %v1070, 0
    %vm1072 = vcmp.lt.s32.totalorder %v1070, 512
    %vm1073 = vmand %vm1071, %vm1072
    %1074 = vst.msk [vmem:[#allocation3] sm:$0xf] %vm1073, %v1068
    // Predicated region
    $region38: #{tpu_custom_call.1} parent=1 // pred_check
      _
    $region39: #{tpu_custom_call.1} parent=1 // pred_check_branch
      %1076 = sbr.rel (0) target = $region41
    $region40: #{tpu_custom_call.1} parent=1 // pred_region
      %1078 = vsyncadd [#allocation4], 0
      %s1080 = sshll.u32 [#allocation3], 4
      %s1081 = int_to_ptr.vmem [resolvable:$true] %s1080
      %s1082 = sshll.u32 %s9, 4
      %s1083 = int_to_ptr.hbm [resolvable:$true] %s1082
      %1085 = dma.vmem_to_hbm [thread:$0]  %s1081, 64, %s1083, [#allocation4]
    $region41: #{tpu_custom_call.1} parent=1 // pred_fallthru
      _
    // Predicated region
    $region42: #{tpu_custom_call.1} parent=1 // pred_check
      _
    $region43: #{tpu_custom_call.1} parent=1 // pred_check_branch
      %1087 = sbr.rel (0) target = $region45
    $region44: #{tpu_custom_call.1} parent=1 // pred_region
      %1089 = dma.done [#allocation4], 64
    $region45: #{tpu_custom_call.1} parent=1 // pred_fallthru
      _
    %1090 = vsyncpa [#allocation4], 1

</llo_original>
